<compile_context>
chip_gen: v7x
topology: tpu7x:2x2x1
jax: 0.10.0
libtpu: 0.0.40
codegen_flags: <defaults>
</compile_context>

<pallas_src>
import functools

import jax
import jax.numpy as jnp
from jax.experimental import pallas as pl
from jax.experimental.pallas import tpu as pltpu


# ----------------------------- Pallas kernels -----------------------------

def _conv_pool_head_kernel(p_ref, w_ref, b_ref, w1_ref, b1_ref, w2_ref, b2_ref,
                           o_ref, acc_ref, *, m_total, tm):
    """Fused: conv-as-matmul + ReLU + global avg-pool + fc_loc head.

    Grid = (N, num_m_tiles).  Layout is (Cout, tm) with the large spatial
    dimension in lanes.  acc_ref (Cout, 1) holds the per-channel column sum of
    ReLU(w @ p + b) for the current batch element; at the last M tile we
    divide by M and run the fc_loc MLP (Linear -> ReLU -> Linear -> ReLU),
    writing the (1, 9) theta directly.  The full feature map never touches HBM.
    """
    m_idx = pl.program_id(1)
    last_m = pl.num_programs(1) - 1

    @pl.when(m_idx == 0)
    def _():
        acc_ref[...] = jnp.zeros_like(acc_ref)

    # (Cout, K) bf16 @ (K, tm) bf16 -> f32 on the MXU; bias + ReLU in f32.
    f = jnp.dot(w_ref[...], p_ref[...], preferred_element_type=jnp.float32)
    f = jnp.maximum(f + b_ref[...], 0.0)                         # (Cout, tm)

    # NOTE: an MXU ones-vector dot could do this lane-sum "for free", but it
    # would round f to bf16; jnp.sum keeps the f32 accumulation exact.
    if m_total % tm != 0:
        # Ragged M: only the last tile has padded (garbage) columns, so the
        # iota/compare/select masking is gated to that tile only.
        @pl.when(m_idx != last_m)
        def _():
            acc_ref[...] += jnp.sum(f, axis=1, keepdims=True)

        @pl.when(m_idx == last_m)
        def _():
            cols = jax.lax.broadcasted_iota(jnp.int32, f.shape, 1) + m_idx * tm
            acc_ref[...] += jnp.sum(jnp.where(cols < m_total, f, 0.0),
                                    axis=1, keepdims=True)
    else:
        acc_ref[...] += jnp.sum(f, axis=1, keepdims=True)        # (Cout, 1)

    @pl.when(m_idx == last_m)
    def _():
        pooled = acc_ref[...] * (1.0 / float(m_total))           # AdaptiveAvgPool2d((1,1))
        # fc1 as broadcast-multiply + sublane reduce: avoids transposing the
        # (Cout, 1) pooled column; keeps the rest of the head row-oriented.
        h = jnp.sum(pooled * w1_ref[...], axis=0, keepdims=True)  # (1, FC)
        h = jnp.maximum(h + b1_ref[...], 0.0)
        theta = jnp.dot(h, w2_ref[...], preferred_element_type=jnp.float32)
        theta = jnp.maximum(theta + b2_ref[...], 0.0)            # ColorMapNet ReLU
        o_ref[...] = theta                                       # (1, 9)


def _transform_kernel(c_ref, t_ref, y_ref):
    """y[ci, :] = clip(sum_k cmap[ci, k] * t[k, :], -1, 1) for one (batch, hw) tile.

    c_ref is the flattened (N*9,) c_map in SMEM; the 9 scalars are hoisted once
    and broadcast on the VPU (no MXU for the degenerate 3x3 matmul).  Each
    output channel row is stored directly (no concatenate / tile relayout).
    """
    base = pl.program_id(0) * 9
    c = [c_ref[base + i] for i in range(9)]        # hoist 9 SMEM scalar reads
    t0 = t_ref[0:1, :]
    t1 = t_ref[1:2, :]
    t2 = t_ref[2:3, :]
    for ci in range(3):
        acc = c[3 * ci] * t0 + c[3 * ci + 1] * t1 + c[3 * ci + 2] * t2
        y_ref[ci:ci + 1, :] = jnp.clip(acc, -1.0, 1.0)


# ------------------------------ JAX wrappers -------------------------------

def _pick_hw_tile(hw, cap=65536):
    """Lane tile for the color transform.

    Full hw if it fits under the cap (always a legal block shape), otherwise a
    fixed 128-multiple cap.  cap=65536 keeps double-buffered in+out tiles at
    ~3 MiB (safe under v7x's 64 MiB VMEM / the 32 MiB scoped limit) while each
    grid step moves enough bytes to amortize the ~0.35 us per-step overhead.
    Non-divisible hw is handled with a pl.cdiv grid: the padded tail of the
    last block is discarded on writeback, so no full-hw fallback is needed.
    """
    return hw if hw <= cap else cap


def backbone_colormap(x, conv_w, conv_b, fc1_w, fc1_b, fc2_w, fc2_b):
    """Backbone stand-in conv + avgpool + fc_loc, returning c_map (N, 3, 3)."""
    N = x.shape[0]
    # im2col directly in NCHW: no transpose pass over x, and the (N, K, M)
    # view keeps the big M dimension last (lane-dense loads in the kernel).
    # TODO(synk): the patches are still materialized in HBM; building them
    # inside the kernel (DMA a row band + shifted slices) would remove that
    # round trip entirely.
    patches = jax.lax.conv_general_dilated_patches(
        x, filter_shape=(3, 3), window_strides=(2, 2),
        padding=((1, 1), (1, 1)),
        dimension_numbers=('NCHW', 'OIHW', 'NCHW'))              # (N, K, Ho, Wo)
    _, K, Ho, Wo = patches.shape
    M = Ho * Wo

    p3d = patches.reshape(N, K, M).astype(jnp.bfloat16)          # bf16 storage
    w_t = conv_w.astype(jnp.bfloat16).T                          # (Cout, K)
    Cout = conv_w.shape[1]
    FC = fc1_w.shape[1]

    # Column tile: full M if small (always legal), else 4096 lanes (multiple
    # of 128).  The bf16 tile is ~256 KB padded, so VMEM is never a concern.
    tm = M if M <= 4096 else 4096
    num_m = pl.cdiv(M, tm)

    kernel = functools.partial(_conv_pool_head_kernel, m_total=M, tm=tm)
    c_map2d = pl.pallas_call(
        kernel,
        grid=(N, num_m),
        in_specs=[
            pl.BlockSpec((None, K, tm), lambda n, m: (n, 0, m)),   # patch cols
            pl.BlockSpec((Cout, K), lambda n, m: (0, 0)),          # conv weight^T
            pl.BlockSpec((Cout, 1), lambda n, m: (0, 0)),          # conv bias
            pl.BlockSpec((Cout, FC), lambda n, m: (0, 0)),         # fc1 weight
            pl.BlockSpec((1, FC), lambda n, m: (0, 0)),            # fc1 bias
            pl.BlockSpec((FC, 9), lambda n, m: (0, 0)),            # fc2 weight
            pl.BlockSpec((1, 9), lambda n, m: (0, 0)),             # fc2 bias
        ],
        out_specs=pl.BlockSpec((None, 1, 9), lambda n, m: (n, 0, 0)),
        out_shape=jax.ShapeDtypeStruct((N, 1, 9), jnp.float32),
        scratch_shapes=[pltpu.VMEM((Cout, 1), jnp.float32)],
        compiler_params=pltpu.CompilerParams(
            dimension_semantics=("parallel", "arbitrary"),
            vmem_limit_bytes=32 * 1024 * 1024),
    )(p3d, w_t, conv_b.reshape(Cout, 1), fc1_w, fc1_b.reshape(1, FC),
      fc2_w, fc2_b.reshape(1, 9))
    return c_map2d.reshape(N, 3, 3)


def color_transform(c_map, template):
    """y = clamp(c_map @ template.view(n, c, -1), -1, 1).view(n, c, h, w)."""
    n, c, h, w = template.shape
    assert c == 3, "color transform expects 3 channels"
    hw = h * w
    thw = _pick_hw_tile(hw)
    num_t = pl.cdiv(hw, thw)

    t_flat = template.reshape(n, c, hw)
    c_flat = c_map.reshape(n * 9)      # 1-D SMEM: pads to next pow2, not (8,128)

    # TODO(synk): the transform could run in bf16 (template/output) to halve
    # HBM traffic, but that changes numerics vs the f32 PyTorch module.
    y = pl.pallas_call(
        _transform_kernel,
        grid=(n, num_t),
        in_specs=[
            pl.BlockSpec(memory_space=pltpu.MemorySpace.SMEM),      # c_map scalars
            pl.BlockSpec((None, c, thw), lambda i, t: (i, 0, t)),   # template tile
        ],
        out_specs=pl.BlockSpec((None, c, thw), lambda i, t: (i, 0, t)),
        out_shape=jax.ShapeDtypeStruct((n, c, hw), jnp.float32),
        compiler_params=pltpu.CompilerParams(
            dimension_semantics=("parallel", "parallel"),
            vmem_limit_bytes=32 * 1024 * 1024),
    )(c_flat, t_flat)
    return y.reshape(n, c, h, w)


@jax.jit
def _forward(x, template, conv_w, conv_b, fc1_w, fc1_b, fc2_w, fc2_b):
    c_map = backbone_colormap(x, conv_w, conv_b, fc1_w, fc1_b, fc2_w, fc2_b)
    y = color_transform(c_map, template)
    return y, c_map


class LightingColorTransformerPallas:
    """JAX/Pallas re-implementation of LightingColorTransformer.forward."""

    def __init__(self, key, last_conv_dim=32, fc_dim=32):
        k1, k2, k3 = jax.random.split(key, 3)
        # TODO(synk): the real ResNet backbone (get_backbone(config['loc_backbone']))
        # is not provided; a single 3x3/stride-2/pad-1 conv + ReLU with synthetic
        # weights stands in for `self.backbone`.
        self.conv_w = jax.random.normal(k1, (3 * 3 * 3, last_conv_dim), jnp.float32) * 0.1
        self.conv_b = jnp.zeros((last_conv_dim,), jnp.float32)
        # fc_loc: Dropout(0.3) -> Linear(last_conv_dim, fc_dim) -> ReLU -> Linear(fc_dim, 9)
        # TODO(synk): Dropout(0.3) is treated as eval-mode identity.
        self.fc1_w = jax.random.normal(k2, (last_conv_dim, fc_dim), jnp.float32) * 0.05
        self.fc1_b = jax.random.normal(k3, (fc_dim,), jnp.float32) * 0.01
        # ColorMapNet.__init__: final linear weight zeroed, bias = 3x3 identity.
        self.fc2_w = jnp.zeros((fc_dim, 9), jnp.float32)
        self.fc2_b = jnp.array([1, 0, 0, 0, 1, 0, 0, 0, 1], jnp.float32)

    def __call__(self, x, template):
        return _forward(x, template, self.conv_w, self.conv_b,
                        self.fc1_w, self.fc1_b, self.fc2_w, self.fc2_b)


# ---------------------------- pure-JAX reference ---------------------------

def _reference(m, x, template):
    N = x.shape[0]
    patches = jax.lax.conv_general_dilated_patches(
        x, (3, 3), (2, 2), ((1, 1), (1, 1)),
        dimension_numbers=('NCHW', 'OIHW', 'NCHW'))
    _, K, Ho, Wo = patches.shape
    # match kernel's bf16 storage of conv operands (f32 accumulate)
    p = patches.reshape(N, K, Ho * Wo).astype(jnp.bfloat16).astype(jnp.float32)
    w = m.conv_w.astype(jnp.bfloat16).astype(jnp.float32)
    feat = jnp.maximum(jnp.einsum('nkm,kc->nmc', p, w) + m.conv_b, 0.0)
    pooled = feat.mean(axis=1)                                    # (N, Cout)
    h = jnp.maximum(jnp.sum(pooled[:, :, None] * m.fc1_w[None, :, :], axis=1)
                    + m.fc1_b, 0.0)
    theta = jnp.maximum(h @ m.fc2_w + m.fc2_b, 0.0).reshape(N, 3, 3)
    t_flat = template.reshape(N, 3, -1)
    y = jnp.clip(jnp.einsum('nij,njk->nik', theta, t_flat), -1.0, 1.0)
    return y.reshape(template.shape), theta


# ---------------------------------- main -----------------------------------

if __name__ == "__main__":
    key = jax.random.PRNGKey(0)
    k_param, k_x, k_t, k_w2 = jax.random.split(key, 4)

    N, H, W = 2, 16, 16
    x = jax.random.normal(k_x, (N, 3, H, W), jnp.float32)
    template = jax.random.normal(k_t, (N, 3, H, W), jnp.float32)

    model = LightingColorTransformerPallas(k_param, last_conv_dim=32, fc_dim=32)
    # Perturb the (spec-faithful) zero-initialized final linear so the test
    # exercises a non-trivial c_map instead of the identity.
    model.fc2_w = jax.random.normal(k_w2, (32, 9), jnp.float32) * 0.05

    y, c_map = model(x, template)
    y = jax.block_until_ready(y)
    c_map = jax.block_until_ready(c_map)

    y_ref, c_ref = _reference(model, x, template)
    assert y.shape == (N, 3, H, W) and c_map.shape == (N, 3, 3)
    assert jnp.allclose(c_map, c_ref, atol=1e-4, rtol=1e-4), \
        float(jnp.max(jnp.abs(c_map - c_ref)))
    assert jnp.allclose(y, y_ref, atol=1e-4, rtol=1e-4), \
        float(jnp.max(jnp.abs(y - y_ref)))

    print("KERNEL_OK")
</pallas_src>

<mosaic_0001>
module attributes {stable_mosaic.version = 11 : i64} {
  func.func @_conv_pool_head_kernel(%arg0: i32, %arg1: i32, %arg2: memref<1x27x64xbf16, #tpu.memory_space<vmem>>, %arg3: memref<32x27xbf16, #tpu.memory_space<vmem>>, %arg4: memref<32x1xf32, #tpu.memory_space<vmem>>, %arg5: memref<32x32xf32, #tpu.memory_space<vmem>>, %arg6: memref<1x32xf32, #tpu.memory_space<vmem>>, %arg7: memref<32x9xf32, #tpu.memory_space<vmem>>, %arg8: memref<1x9xf32, #tpu.memory_space<vmem>>, %arg9: memref<1x1x9xf32, #tpu.memory_space<vmem>>, %arg10: memref<32x1xf32, #tpu.memory_space<vmem>>) attributes {dimension_semantics = [#tpu.dimension_semantics<parallel>, #tpu.dimension_semantics<arbitrary>], iteration_bounds = array<i64: 2, 1>, scalar_prefetch = 0 : i64, scratch_operands = 1 : i64, tpu.core_type = #tpu.core_type<tc>, window_params = [{transform_indices = @transform_0, window_bounds = array<i64: 1, 27, 64>}, {pipeline_mode = #tpu.pipeline_mode<synchronous>, transform_indices = @transform_1, window_bounds = array<i64: 32, 27>}, {pipeline_mode = #tpu.pipeline_mode<synchronous>, transform_indices = @transform_2, window_bounds = array<i64: 32, 1>}, {pipeline_mode = #tpu.pipeline_mode<synchronous>, transform_indices = @transform_3, window_bounds = array<i64: 32, 32>}, {pipeline_mode = #tpu.pipeline_mode<synchronous>, transform_indices = @transform_4, window_bounds = array<i64: 1, 32>}, {pipeline_mode = #tpu.pipeline_mode<synchronous>, transform_indices = @transform_5, window_bounds = array<i64: 32, 9>}, {pipeline_mode = #tpu.pipeline_mode<synchronous>, transform_indices = @transform_6, window_bounds = array<i64: 1, 9>}, {transform_indices = @transform_7, window_bounds = array<i64: 1, 1, 9>}]} {
    %c0_i32 = arith.constant 0 : i32
    %0 = arith.cmpi eq, %arg1, %c0_i32 : i32
    %1 = arith.extui %0 : i1 to i32
    %c0_i32_0 = arith.constant 0 : i32
    %2 = arith.cmpi ne, %1, %c0_i32_0 : i32
    scf.if %2 {
      %cst_15 = arith.constant 0.000000e+00 : f32
      %20 = vector.broadcast %cst_15 : f32 to vector<32x1xf32>
      %c0_16 = arith.constant 0 : index
      %c0_17 = arith.constant 0 : index
      %21 = vector.load %arg10[%c0_16, %c0_17] : memref<32x1xf32, #tpu.memory_space<vmem>>, vector<32x1xf32>
      tpu.vector_store %arg10[%c0_16, %c0_17], %20 {strides = array<i32>} : memref<32x1xf32, #tpu.memory_space<vmem>>, vector<32x1xf32>,
    } else {
    }
    %c0 = arith.constant 0 : index
    %c0_1 = arith.constant 0 : index
    %3 = vector.load %arg3[%c0, %c0_1] : memref<32x27xbf16, #tpu.memory_space<vmem>>, vector<32x27xbf16>
    %c0_2 = arith.constant 0 : index
    %c0_3 = arith.constant 0 : index
    %c0_4 = arith.constant 0 : index
    %4 = vector.load %arg2[%c0_2, %c0_3, %c0_4] : memref<1x27x64xbf16, #tpu.memory_space<vmem>>, vector<1x27x64xbf16>
    %5 = vector.shape_cast %4 : vector<1x27x64xbf16> to vector<27x64xbf16>
    %cst = arith.constant dense<0.000000e+00> : vector<32x64xf32>
    %6 = tpu.matmul %3, %5, %cst {dimension_numbers = #tpu.dot_dimension_numbers<[1], [0], [0], [1], [0, 0, 1, 1], [], []>} : vector<32x27xbf16>, vector<27x64xbf16>, vector<32x64xf32> -> vector<32x64xf32>
    %c0_5 = arith.constant 0 : index
    %c0_6 = arith.constant 0 : index
    %7 = vector.load %arg4[%c0_5, %c0_6] : memref<32x1xf32, #tpu.memory_space<vmem>>, vector<32x1xf32>
    %8 = vector.broadcast %7 : vector<32x1xf32> to vector<32x64xf32>
    %9 = arith.addf %6, %8 : vector<32x64xf32>
    %cst_7 = arith.constant 0.000000e+00 : f32
    %10 = vector.broadcast %cst_7 : f32 to vector<32x64xf32>
    %11 = arith.maximumf %9, %10 : vector<32x64xf32>
    %c0_8 = arith.constant 0 : index
    %c0_9 = arith.constant 0 : index
    %12 = vector.load %arg10[%c0_8, %c0_9] : memref<32x1xf32, #tpu.memory_space<vmem>>, vector<32x1xf32>
    %cst_10 = arith.constant dense<0.000000e+00> : vector<32xf32>
    %13 = vector.multi_reduction <add>, %11, %cst_10 [1] : vector<32x64xf32> to vector<32xf32>
    %14 = vector.shape_cast %13 : vector<32xf32> to vector<32x1xf32>
    %15 = arith.addf %12, %14 : vector<32x1xf32>
    %c0_11 = arith.constant 0 : index
    %c0_12 = arith.constant 0 : index
    %16 = vector.load %arg10[%c0_11, %c0_12] : memref<32x1xf32, #tpu.memory_space<vmem>>, vector<32x1xf32>
    tpu.vector_store %arg10[%c0_11, %c0_12], %15 {strides = array<i32>} : memref<32x1xf32, #tpu.memory_space<vmem>>, vector<32x1xf32>,
    %c0_i32_13 = arith.constant 0 : i32
    %17 = arith.cmpi eq, %arg1, %c0_i32_13 : i32
    %18 = arith.extui %17 : i1 to i32
    %c0_i32_14 = arith.constant 0 : i32
    %19 = arith.cmpi ne, %18, %c0_i32_14 : i32
    scf.if %19 {
      %c0_15 = arith.constant 0 : index
      %c0_16 = arith.constant 0 : index
      %20 = vector.load %arg10[%c0_15, %c0_16] : memref<32x1xf32, #tpu.memory_space<vmem>>, vector<32x1xf32>
      %cst_17 = arith.constant 1.562500e-02 : f32
      %21 = vector.broadcast %cst_17 : f32 to vector<32x1xf32>
      %22 = arith.mulf %20, %21 : vector<32x1xf32>
      %c0_18 = arith.constant 0 : index
      %c0_19 = arith.constant 0 : index
      %23 = vector.load %arg5[%c0_18, %c0_19] : memref<32x32xf32, #tpu.memory_space<vmem>>, vector<32x32xf32>
      %24 = vector.broadcast %22 : vector<32x1xf32> to vector<32x32xf32>
      %25 = arith.mulf %24, %23 : vector<32x32xf32>
      %cst_20 = arith.constant dense<0.000000e+00> : vector<32xf32>
      %26 = vector.multi_reduction <add>, %25, %cst_20 [0] : vector<32x32xf32> to vector<32xf32>
      %27 = vector.shape_cast %26 : vector<32xf32> to vector<1x32xf32>
      %c0_21 = arith.constant 0 : index
      %c0_22 = arith.constant 0 : index
      %28 = vector.load %arg6[%c0_21, %c0_22] : memref<1x32xf32, #tpu.memory_space<vmem>>, vector<1x32xf32>
      %29 = arith.addf %27, %28 : vector<1x32xf32>
      %cst_23 = arith.constant 0.000000e+00 : f32
      %30 = vector.broadcast %cst_23 : f32 to vector<1x32xf32>
      %31 = arith.maximumf %29, %30 : vector<1x32xf32>
      %c0_24 = arith.constant 0 : index
      %c0_25 = arith.constant 0 : index
      %32 = vector.load %arg7[%c0_24, %c0_25] : memref<32x9xf32, #tpu.memory_space<vmem>>, vector<32x9xf32>
      %cst_26 = arith.constant dense<0.000000e+00> : vector<1x9xf32>
      %33 = tpu.matmul %31, %32, %cst_26 {dimension_numbers = #tpu.dot_dimension_numbers<[1], [0], [0], [1], [0, 0, 1, 1], [], []>} : vector<1x32xf32>, vector<32x9xf32>, vector<1x9xf32> -> vector<1x9xf32>
      %c0_27 = arith.constant 0 : index
      %c0_28 = arith.constant 0 : index
      %34 = vector.load %arg8[%c0_27, %c0_28] : memref<1x9xf32, #tpu.memory_space<vmem>>, vector<1x9xf32>
      %35 = arith.addf %33, %34 : vector<1x9xf32>
      %cst_29 = arith.constant 0.000000e+00 : f32
      %36 = vector.broadcast %cst_29 : f32 to vector<1x9xf32>
      %37 = arith.maximumf %35, %36 : vector<1x9xf32>
      %c0_30 = arith.constant 0 : index
      %c0_31 = arith.constant 0 : index
      %c0_32 = arith.constant 0 : index
      %38 = vector.load %arg9[%c0_30, %c0_31, %c0_32] : memref<1x1x9xf32, #tpu.memory_space<vmem>>, vector<1x1x9xf32>
      %39 = vector.shape_cast %38 : vector<1x1x9xf32> to vector<1x9xf32>
      %40 = vector.shape_cast %37 : vector<1x9xf32> to vector<1x1x9xf32>
      tpu.vector_store %arg9[%c0_30, %c0_31, %c0_32], %40 {strides = array<i32>} : memref<1x1x9xf32, #tpu.memory_space<vmem>>, vector<1x1x9xf32>,
    } else {
    }
    return
  }
  func.func @transform_0(%arg0: i32, %arg1: i32) -> (i32, i32, i32) {
    %c0_i32 = arith.constant 0 : i32
    %c0_i32_0 = arith.constant 0 : i32
    return %arg0, %c0_i32, %arg1 : i32, i32, i32
  }
  func.func @transform_1(%arg0: i32, %arg1: i32) -> (i32, i32) {
    %c0_i32 = arith.constant 0 : i32
    %c0_i32_0 = arith.constant 0 : i32
    %c0_i32_1 = arith.constant 0 : i32
    return %c0_i32, %c0_i32_0 : i32, i32
  }
  func.func @transform_2(%arg0: i32, %arg1: i32) -> (i32, i32) {
    %c0_i32 = arith.constant 0 : i32
    %c0_i32_0 = arith.constant 0 : i32
    %c0_i32_1 = arith.constant 0 : i32
    return %c0_i32, %c0_i32_0 : i32, i32
  }
  func.func @transform_3(%arg0: i32, %arg1: i32) -> (i32, i32) {
    %c0_i32 = arith.constant 0 : i32
    %c0_i32_0 = arith.constant 0 : i32
    %c0_i32_1 = arith.constant 0 : i32
    return %c0_i32, %c0_i32_0 : i32, i32
  }
  func.func @transform_4(%arg0: i32, %arg1: i32) -> (i32, i32) {
    %c0_i32 = arith.constant 0 : i32
    %c0_i32_0 = arith.constant 0 : i32
    %c0_i32_1 = arith.constant 0 : i32
    return %c0_i32, %c0_i32_0 : i32, i32
  }
  func.func @transform_5(%arg0: i32, %arg1: i32) -> (i32, i32) {
    %c0_i32 = arith.constant 0 : i32
    %c0_i32_0 = arith.constant 0 : i32
    %c0_i32_1 = arith.constant 0 : i32
    return %c0_i32, %c0_i32_0 : i32, i32
  }
  func.func @transform_6(%arg0: i32, %arg1: i32) -> (i32, i32) {
    %c0_i32 = arith.constant 0 : i32
    %c0_i32_0 = arith.constant 0 : i32
    %c0_i32_1 = arith.constant 0 : i32
    return %c0_i32, %c0_i32_0 : i32, i32
  }
  func.func @transform_7(%arg0: i32, %arg1: i32) -> (i32, i32, i32) {
    %c0_i32 = arith.constant 0 : i32
    %c0_i32_0 = arith.constant 0 : i32
    %c0_i32_1 = arith.constant 0 : i32
    return %arg0, %c0_i32, %c0_i32_0 : i32, i32, i32
  }
}

module attributes {stable_mosaic.version = 11 : i64} {
  func.func @_transform_kernel(%arg0: i32, %arg1: i32, %arg2: memref<18xf32, #tpu.memory_space<smem>>, %arg3: memref<1x3x256xf32, #tpu.memory_space<vmem>>, %arg4: memref<1x3x256xf32, #tpu.memory_space<vmem>>) attributes {dimension_semantics = [#tpu.dimension_semantics<parallel>, #tpu.dimension_semantics<parallel>], iteration_bounds = array<i64: 2, 1>, scalar_prefetch = 0 : i64, scratch_operands = 0 : i64, tpu.core_type = #tpu.core_type<tc>, window_params = [{transform_indices = @transform_0, window_bounds = array<i64: 18>}, {transform_indices = @transform_1, window_bounds = array<i64: 1, 3, 256>}, {transform_indices = @transform_2, window_bounds = array<i64: 1, 3, 256>}]} {
    %c9_i32 = arith.constant 9 : i32
    %0 = arith.muli %arg0, %c9_i32 : i32
    %c0_i32 = arith.constant 0 : i32
    %1 = arith.addi %0, %c0_i32 : i32
    %2 = arith.index_cast %1 : i32 to index
    %3 = memref.load %arg2[%2] : memref<18xf32, #tpu.memory_space<smem>>
    %c1_i32 = arith.constant 1 : i32
    %4 = arith.addi %0, %c1_i32 : i32
    %5 = arith.index_cast %4 : i32 to index
    %6 = memref.load %arg2[%5] : memref<18xf32, #tpu.memory_space<smem>>
    %c2_i32 = arith.constant 2 : i32
    %7 = arith.addi %0, %c2_i32 : i32
    %8 = arith.index_cast %7 : i32 to index
    %9 = memref.load %arg2[%8] : memref<18xf32, #tpu.memory_space<smem>>
    %c3_i32 = arith.constant 3 : i32
    %10 = arith.addi %0, %c3_i32 : i32
    %11 = arith.index_cast %10 : i32 to index
    %12 = memref.load %arg2[%11] : memref<18xf32, #tpu.memory_space<smem>>
    %c4_i32 = arith.constant 4 : i32
    %13 = arith.addi %0, %c4_i32 : i32
    %14 = arith.index_cast %13 : i32 to index
    %15 = memref.load %arg2[%14] : memref<18xf32, #tpu.memory_space<smem>>
    %c5_i32 = arith.constant 5 : i32
    %16 = arith.addi %0, %c5_i32 : i32
    %17 = arith.index_cast %16 : i32 to index
    %18 = memref.load %arg2[%17] : memref<18xf32, #tpu.memory_space<smem>>
    %c6_i32 = arith.constant 6 : i32
    %19 = arith.addi %0, %c6_i32 : i32
    %20 = arith.index_cast %19 : i32 to index
    %21 = memref.load %arg2[%20] : memref<18xf32, #tpu.memory_space<smem>>
    %c7_i32 = arith.constant 7 : i32
    %22 = arith.addi %0, %c7_i32 : i32
    %23 = arith.index_cast %22 : i32 to index
    %24 = memref.load %arg2[%23] : memref<18xf32, #tpu.memory_space<smem>>
    %c8_i32 = arith.constant 8 : i32
    %25 = arith.addi %0, %c8_i32 : i32
    %26 = arith.index_cast %25 : i32 to index
    %27 = memref.load %arg2[%26] : memref<18xf32, #tpu.memory_space<smem>>
    %c0 = arith.constant 0 : index
    %c0_0 = arith.constant 0 : index
    %c0_1 = arith.constant 0 : index
    %28 = vector.load %arg3[%c0, %c0_0, %c0_1] : memref<1x3x256xf32, #tpu.memory_space<vmem>>, vector<1x1x256xf32>
    %29 = vector.shape_cast %28 : vector<1x1x256xf32> to vector<1x256xf32>
    %c0_2 = arith.constant 0 : index
    %c1 = arith.constant 1 : index
    %c0_3 = arith.constant 0 : index
    %30 = vector.load %arg3[%c0_2, %c1, %c0_3] : memref<1x3x256xf32, #tpu.memory_space<vmem>>, vector<1x1x256xf32>
    %31 = vector.shape_cast %30 : vector<1x1x256xf32> to vector<1x256xf32>
    %c0_4 = arith.constant 0 : index
    %c2 = arith.constant 2 : index
    %c0_5 = arith.constant 0 : index
    %32 = vector.load %arg3[%c0_4, %c2, %c0_5] : memref<1x3x256xf32, #tpu.memory_space<vmem>>, vector<1x1x256xf32>
    %33 = vector.shape_cast %32 : vector<1x1x256xf32> to vector<1x256xf32>
    %34 = vector.broadcast %3 : f32 to vector<1x256xf32>
    %35 = arith.mulf %34, %29 : vector<1x256xf32>
    %36 = vector.broadcast %6 : f32 to vector<1x256xf32>
    %37 = arith.mulf %36, %31 : vector<1x256xf32>
    %38 = arith.addf %35, %37 : vector<1x256xf32>
    %39 = vector.broadcast %9 : f32 to vector<1x256xf32>
    %40 = arith.mulf %39, %33 : vector<1x256xf32>
    %41 = arith.addf %38, %40 : vector<1x256xf32>
    %cst = arith.constant -1.000000e+00 : f32
    %cst_6 = arith.constant 1.000000e+00 : f32
    %42 = vector.broadcast %cst : f32 to vector<1x256xf32>
    %43 = arith.maximumf %42, %41 : vector<1x256xf32>
    %44 = vector.broadcast %cst_6 : f32 to vector<1x256xf32>
    %45 = arith.minimumf %44, %43 : vector<1x256xf32>
    %c0_7 = arith.constant 0 : index
    %c0_8 = arith.constant 0 : index
    %c0_9 = arith.constant 0 : index
    %46 = vector.load %arg4[%c0_7, %c0_8, %c0_9] : memref<1x3x256xf32, #tpu.memory_space<vmem>>, vector<1x1x256xf32>
    %47 = vector.shape_cast %46 : vector<1x1x256xf32> to vector<1x256xf32>
    %48 = vector.shape_cast %45 : vector<1x256xf32> to vector<1x1x256xf32>
    tpu.vector_store %arg4[%c0_7, %c0_8, %c0_9], %48 {strides = array<i32>} : memref<1x3x256xf32, #tpu.memory_space<vmem>>, vector<1x1x256xf32>,
    %49 = vector.broadcast %12 : f32 to vector<1x256xf32>
    %50 = arith.mulf %49, %29 : vector<1x256xf32>
    %51 = vector.broadcast %15 : f32 to vector<1x256xf32>
    %52 = arith.mulf %51, %31 : vector<1x256xf32>
    %53 = arith.addf %50, %52 : vector<1x256xf32>
    %54 = vector.broadcast %18 : f32 to vector<1x256xf32>
    %55 = arith.mulf %54, %33 : vector<1x256xf32>
    %56 = arith.addf %53, %55 : vector<1x256xf32>
    %cst_10 = arith.constant -1.000000e+00 : f32
    %cst_11 = arith.constant 1.000000e+00 : f32
    %57 = vector.broadcast %cst_10 : f32 to vector<1x256xf32>
    %58 = arith.maximumf %57, %56 : vector<1x256xf32>
    %59 = vector.broadcast %cst_11 : f32 to vector<1x256xf32>
    %60 = arith.minimumf %59, %58 : vector<1x256xf32>
    %c0_12 = arith.constant 0 : index
    %c1_13 = arith.constant 1 : index
    %c0_14 = arith.constant 0 : index
    %61 = vector.load %arg4[%c0_12, %c1_13, %c0_14] : memref<1x3x256xf32, #tpu.memory_space<vmem>>, vector<1x1x256xf32>
    %62 = vector.shape_cast %61 : vector<1x1x256xf32> to vector<1x256xf32>
    %63 = vector.shape_cast %60 : vector<1x256xf32> to vector<1x1x256xf32>
    tpu.vector_store %arg4[%c0_12, %c1_13, %c0_14], %63 {strides = array<i32>} : memref<1x3x256xf32, #tpu.memory_space<vmem>>, vector<1x1x256xf32>,
    %64 = vector.broadcast %21 : f32 to vector<1x256xf32>
    %65 = arith.mulf %64, %29 : vector<1x256xf32>
    %66 = vector.broadcast %24 : f32 to vector<1x256xf32>
    %67 = arith.mulf %66, %31 : vector<1x256xf32>
    %68 = arith.addf %65, %67 : vector<1x256xf32>
    %69 = vector.broadcast %27 : f32 to vector<1x256xf32>
    %70 = arith.mulf %69, %33 : vector<1x256xf32>
    %71 = arith.addf %68, %70 : vector<1x256xf32>
    %cst_15 = arith.constant -1.000000e+00 : f32
    %cst_16 = arith.constant 1.000000e+00 : f32
    %72 = vector.broadcast %cst_15 : f32 to vector<1x256xf32>
    %73 = arith.maximumf %72, %71 : vector<1x256xf32>
    %74 = vector.broadcast %cst_16 : f32 to vector<1x256xf32>
    %75 = arith.minimumf %74, %73 : vector<1x256xf32>
    %c0_17 = arith.constant 0 : index
    %c2_18 = arith.constant 2 : index
    %c0_19 = arith.constant 0 : index
    %76 = vector.load %arg4[%c0_17, %c2_18, %c0_19] : memref<1x3x256xf32, #tpu.memory_space<vmem>>, vector<1x1x256xf32>
    %77 = vector.shape_cast %76 : vector<1x1x256xf32> to vector<1x256xf32>
    %78 = vector.shape_cast %75 : vector<1x256xf32> to vector<1x1x256xf32>
    tpu.vector_store %arg4[%c0_17, %c2_18, %c0_19], %78 {strides = array<i32>} : memref<1x3x256xf32, #tpu.memory_space<vmem>>, vector<1x1x256xf32>,
    return
  }
  func.func @transform_0(%arg0: i32, %arg1: i32) -> i32 {
    %c0_i32 = arith.constant 0 : i32
    %c0_i32_0 = arith.constant 0 : i32
    return %c0_i32 : i32
  }
  func.func @transform_1(%arg0: i32, %arg1: i32) -> (i32, i32, i32) {
    %c0_i32 = arith.constant 0 : i32
    %c0_i32_0 = arith.constant 0 : i32
    return %arg0, %c0_i32, %arg1 : i32, i32, i32
  }
  func.func @transform_2(%arg0: i32, %arg1: i32) -> (i32, i32, i32) {
    %c0_i32 = arith.constant 0 : i32
    %c0_i32_0 = arith.constant 0 : i32
    return %arg0, %c0_i32, %arg1 : i32, i32, i32
  }
}

</mosaic_0001>

<llo_original>
// kernel: _forward.3
$region0: #{_forward.3}
  #allocation0 [shape = 'u32[]', space=smem, size = 0x4, offset = 0x4, fixed_abs, tag = 'smem constant byte address 0x4 - core index']
  #allocation1 [shape = 'u32[144,128]{1,0:T(1,128)}', space=vmem, size = 0x12000, scoped, tag = 'internal scratch']
  %s0 = inlined_call_operand.vmem [shape: f32[18], index: 0, kind: input, shape index: {}]
  %s1 = inlined_call_operand.vmem [shape: f32[2,3,256], index: 1, kind: input, shape index: {}]
  %s2 = inlined_call_operand.vmem [shape: f32[2,3,256], index: 2, kind: output, shape index: {}]
  %s3 = sld [smem:[#allocation0]]
  $region45: #{_forward.3} parent=0
    _
  %s5 = ssub.s32 1, %s3
  %s6 = scalar_select 0, %s5, %s3
  $region1: #{_forward.3} parent=0
    #allocation2 [shape = 'u8[512]{0}', space=smem, size = 0x200, scoped, tag = 'input window, operand 0, single buffered']
    #allocation3 [shape = 's32[2]{0}', space=sflag, size = 0x8, scoped, tag = 'scoped memory for _forward.3']
    %7 = vsyncpa [#allocation3], 0
    loop: start=0, step=1, limit=4
    $region2: #{_forward.3} parent=1 // loop_pre_header
      _
    $region3: #{_forward.3} parent=1 // loop_header
      %s9 = sphi 0, %s13
      %p10 = scmp.ge.s32.totalorder %s9, 4
      %s16 = sphi 0, %s28
      %s17 = sphi 0, %s24
      %s18 = sphi 0, %s16
      %s19 = sphi 0, %s17
      %s20 = sphi 0, %s18
      %s21 = sphi 0, %s19
      %s29 = sphi 0, %s29
      %s31 = sphi 0, %s29
      %s32 = sphi 0, %s31
      %s46 = sphi 0, %s32
      %s54 = sphi 0, %s56
      %s57 = sphi 0, %s54
      %s58 = sphi 0, %s57
      %s74 = sphi 0, %s58
      %s82 = sphi 0, %s84
      %s85 = sphi 0, %s82
      %s86 = sphi 0, %s85
      %s102 = sphi 0, %s86
    $region4: #{_forward.3} parent=1 // loop_header_branch
      %12 = sbr.rel (%p10) target = $region8
    $region5: #{_forward.3} parent=1 // loop_body
      %s14 = ssub.s32 %s9, 1
      %s15 = ssub.s32 %s9, 2
      %s22 = sadd.s32 1, %s17
      %p23 = scmp.ge.s32.totalorder %s22, 1
      %s24 = scalar_select %p23, 0, %s22
      %s25 = sadd.s32 1, %s16
      %s26 = scalar_select %p23, %s25, %s16
      %p27 = scmp.ge.s32.totalorder %s26, 2
      %s28 = scalar_select %p27, 0, %s26
      %s30 = sadd.s32 %s29, 1
      %p33 = scmp.eq.s32.totalorder %s9, 1
      %p34 = scmp.ne.s32.totalorder %s29, %s31
      %p35 = scmp.eq.s32.totalorder %s9, 0
      %p36 = por %p34, %p35
      %p37 = scmp.ne.s32.totalorder %s29, %s31
      %p38 = scmp.eq.s32.totalorder %s14, 1
      %p39 = por %p37, %p38
      %p40 = scmp.ne.s32.totalorder %s31, %s32
      %p41 = scmp.eq.s32.totalorder %s14, 0
      %p42 = por %p40, %p41
      %p43 = scmp.ne.s32.totalorder %s31, %s32
      %p44 = scmp.eq.s32.totalorder %s15, 1
      %p45 = por %p43, %p44
      %p47 = scmp.ne.s32.totalorder %s32, %s46
      %p48 = scmp.eq.s32.totalorder %s15, 0
      %p49 = por %p47, %p48
      %s50 = ssub.s32 %s16, %s28
      %s51 = ssub.s32 %s17, %s24
      %s52 = sor.u32 %s50, %s51
      %p53 = scmp.eq.s32.totalorder %s52, 0
      %s55 = sadd.s32 %s54, 1
      %s56 = scalar_select %p53, %s54, %s55
      %p59 = pneg %p53
      %p60 = scmp.eq.s32.totalorder %s9, 1
      %p61 = por %p59, %p60
      %p62 = scmp.ne.s32.totalorder %s54, %s57
      %p63 = scmp.eq.s32.totalorder %s9, 0
      %p64 = por %p62, %p63
      %p65 = scmp.ne.s32.totalorder %s54, %s57
      %p66 = scmp.eq.s32.totalorder %s14, 1
      %p67 = por %p65, %p66
      %p68 = scmp.ne.s32.totalorder %s57, %s58
      %p69 = scmp.eq.s32.totalorder %s14, 0
      %p70 = por %p68, %p69
      %p71 = scmp.ne.s32.totalorder %s57, %s58
      %p72 = scmp.eq.s32.totalorder %s15, 1
      %p73 = por %p71, %p72
      %p75 = scmp.ne.s32.totalorder %s58, %s74
      %p76 = scmp.eq.s32.totalorder %s15, 0
      %p77 = por %p75, %p76
      %s78 = ssub.s32 %s16, %s28
      %s79 = ssub.s32 %s17, %s24
      %s80 = sor.u32 %s78, %s79
      %p81 = scmp.eq.s32.totalorder %s80, 0
      %s83 = sadd.s32 %s82, 1
      %s84 = scalar_select %p81, %s82, %s83
      %p87 = pneg %p81
      %p88 = scmp.eq.s32.totalorder %s9, 1
      %p89 = por %p87, %p88
      %p90 = scmp.ne.s32.totalorder %s82, %s85
      %p91 = scmp.eq.s32.totalorder %s9, 0
      %p92 = por %p90, %p91
      %p93 = scmp.ne.s32.totalorder %s82, %s85
      %p94 = scmp.eq.s32.totalorder %s14, 1
      %p95 = por %p93, %p94
      %p96 = scmp.ne.s32.totalorder %s85, %s86
      %p97 = scmp.eq.s32.totalorder %s14, 0
      %p98 = por %p96, %p97
      %p99 = scmp.ne.s32.totalorder %s85, %s86
      %p100 = scmp.eq.s32.totalorder %s15, 1
      %p101 = por %p99, %p100
      %p103 = scmp.ne.s32.totalorder %s86, %s102
      %p104 = scmp.eq.s32.totalorder %s15, 0
      %p105 = por %p103, %p104
      %p106 = scmp.le.s32.totalorder 1, %s9
      %p107 = scmp.lt.s32.totalorder %s9, 3
      %p108 = pnand %p106, %p107
      %p109 = pneg %p108
      // Predicated region
      $region9: #{_forward.3} parent=5 // pred_check
        _
      $region10: #{_forward.3} parent=5 // pred_check_branch
        %111 = sbr.rel (%p108) target = $region12
      $region11: #{_forward.3} parent=5 // pred_region
        %s112 = ssub.s32 %s9, 1
        // Predicated region
        $region13: #{_forward.3} parent=11 // pred_check
          %p113 = pneg %p42
        $region14: #{_forward.3} parent=11 // pred_check_branch
          %115 = sbr.rel (%p113) target = $region16
        $region15: #{_forward.3} parent=11 // pred_region
          %s117 = ssub.s32 16, 16
          %118 = vsyncadd [#allocation3], %s117
          %s120 = sshll.u32 %s0, 4
          %s121 = int_to_ptr.vmem [resolvable:$true] %s120
          %123 = dma.vmem_to_smem %s121, 16, [#allocation2], [#allocation3]
        $region16: #{_forward.3} parent=11 // pred_fallthru
          _
      $region12: #{_forward.3} parent=5 // pred_fallthru
        _
      %p124 = scmp.lt.s32.totalorder %s9, 2
      // Predicated region
      $region17: #{_forward.3} parent=5 // pred_check
        %p125 = pneg %p124
      $region18: #{_forward.3} parent=5 // pred_check_branch
        %127 = sbr.rel (%p125) target = $region20
      $region19: #{_forward.3} parent=5 // pred_region
        // Predicated region
        $region21: #{_forward.3} parent=19 // pred_check
          %p128 = pneg %p64
        $region22: #{_forward.3} parent=19 // pred_check_branch
          %130 = sbr.rel (%p128) target = $region24
        $region23: #{_forward.3} parent=19 // pred_region
          %s131 = smul.u32 2, %s17
          %p132 = scmp.lt.s32.totalorder %s16, 1
          %s133 = scalar_select %p132, %s16, 1
          %p134 = scmp.lt.s32.totalorder %s131, 1
          %s135 = scalar_select %p134, %s131, 1
          %s136 = smul.addr %s133, 2
          %s137 = sadd.s32 %s135, %s136
          %s138 = smul.addr %s137, 4
          %s139 = scalar_lea.vmem %s1, %s138
          %s140 = smul.u32 2, %s17
        $region24: #{_forward.3} parent=19 // pred_fallthru
          _
      $region20: #{_forward.3} parent=5 // pred_fallthru
        _
      %p141 = scmp.le.s32.totalorder 1, %s9
      %p142 = scmp.lt.s32.totalorder %s9, 3
      %p143 = pnand %p141, %p142
      %p144 = pneg %p143
      // Predicated region
      $region25: #{_forward.3} parent=5 // pred_check
        _
      $region26: #{_forward.3} parent=5 // pred_check_branch
        %146 = sbr.rel (%p143) target = $region28
      $region27: #{_forward.3} parent=5 // pred_region
        %s147 = ssub.s32 %s9, 1
        // Predicated region
        $region29: #{_forward.3} parent=27 // pred_check
          %p148 = pneg %p42
        $region30: #{_forward.3} parent=27 // pred_check_branch
          %150 = sbr.rel (%p148) target = $region32
        $region31: #{_forward.3} parent=27 // pred_region
          %151 = dma.done [#allocation3], 16
        $region32: #{_forward.3} parent=27 // pred_fallthru
          _
        %152 = sfence
        %p153 = pneg %p42
        %p154 = pneg %p39
        %s155 = smul.u32 2, %s19
        %p156 = scmp.lt.s32.totalorder %s18, 1
        %s157 = scalar_select %p156, %s18, 1
        %p158 = scmp.lt.s32.totalorder %s155, 1
        %s159 = scalar_select %p158, %s155, 1
        %s160 = smul.addr %s157, 2
        %s161 = sadd.s32 %s159, %s160
        %s162 = smul.addr %s161, 4
        %s163 = scalar_lea.vmem %s1, %s162
        %p164 = pneg %p70
        %p165 = pneg %p67
        %p166 = pneg %p98
        %p167 = pneg %p95
        %s168 = smul.u32 2, %s19
        %p169 = scmp.lt.s32.totalorder %s18, 1
        %s170 = scalar_select %p169, %s18, 1
        %p171 = scmp.lt.s32.totalorder %s168, 1
        %s172 = scalar_select %p171, %s168, 1
        %s173 = smul.addr %s170, 2
        %s174 = sadd.s32 %s172, %s173
        %s175 = smul.addr %s174, 4
        %s176 = scalar_lea.vmem %s2, %s175
        %s177 = smul.u32 2, %s19
        %p178 = scmp.lt.s32.totalorder %s18, 1
        %s179 = scalar_select %p178, %s18, 1
        %p180 = scmp.lt.s32.totalorder %s177, 1
        %s181 = scalar_select %p180, %s177, 1
        %s182 = smul.addr %s179, 2
        %s183 = sadd.s32 %s181, %s182
        %s184 = smul.addr %s183, 4
        %s185 = scalar_lea.vmem %s1, %s184
        %s186 = smul.u32 2, %s19
        %s187 = smul.u32 2, %s19
        %p188 = scmp.lt.s32.totalorder %s18, 1
        %s189 = scalar_select %p188, %s18, 1
        %p190 = scmp.lt.s32.totalorder %s187, 1
        %s191 = scalar_select %p190, %s187, 1
        %s192 = smul.addr %s189, 2
        %s193 = sadd.s32 %s191, %s192
        %s194 = smul.addr %s193, 4
        %s195 = scalar_lea.vmem %s2, %s194
        %s196 = smul.u32 2, %s19
        %s197 = smul.u32 %s18, 9
        %s198 = sld [smem:[#allocation2 + %s197]]
        %s199 = sadd.s32 %s197, 1
        %s200 = sld [smem:[#allocation2 + %s199]]
        %s201 = sadd.s32 %s197, 2
        %s202 = sld [smem:[#allocation2 + %s201]]
        %s203 = sadd.s32 %s197, 3
        %s204 = sld [smem:[#allocation2 + %s203]]
        %s205 = sadd.s32 %s197, 4
        %s206 = sld [smem:[#allocation2 + %s205]]
        %s207 = sadd.s32 %s197, 5
        %s208 = sld [smem:[#allocation2 + %s207]]
        %s209 = sadd.s32 %s197, 6
        %s210 = sld [smem:[#allocation2 + %s209]]
        %s211 = sadd.s32 %s197, 7
        %s212 = sld [smem:[#allocation2 + %s211]]
        %s213 = sadd.s32 %s197, 8
        %s214 = sld [smem:[#allocation2 + %s213]]
        %v215 = vld [vmem:[%s185] ss:$4 sm:$0x3]
        %s216 = scalar_lea.vmem %s185, 1
        %v217 = vld [vmem:[%s216] ss:$4 sm:$0x3]
        %s218 = scalar_lea.vmem %s185, 2
        %v219 = vld [vmem:[%s218] ss:$4 sm:$0x3]
        %v220 = vstv %s198
        %v221 = vmul.f32 %v220, %v215
        %v222 = vstv %s200
        %v223 = vmul.f32 %v222, %v217
        %v224 = vadd.f32 %v221, %v223
        %v225 = vstv %s202
        %v226 = vmul.f32 %v225, %v219
        %v227 = vadd.f32 %v224, %v226
        %v228 = vmax.f32 %v227, -1.0
        %v229 = vmin.f32 %v228, 1.0
        %v230 = vlaneseq
        %vm231 = vcmp.ge.s32.totalorder %v230, 0
        %vm232 = vcmp.lt.s32.totalorder %v230, 256
        %vm233 = vmand %vm231, %vm232
        %234 = vst.msk [vmem:[%s195] ss:$4 sm:$0x3] %vm233, %v229
        %v235 = vstv %s204
        %v236 = vmul.f32 %v235, %v215
        %v237 = vstv %s206
        %v238 = vmul.f32 %v237, %v217
        %v239 = vadd.f32 %v236, %v238
        %v240 = vstv %s208
        %v241 = vmul.f32 %v240, %v219
        %v242 = vadd.f32 %v239, %v241
        %v243 = vmax.f32 %v242, -1.0
        %v244 = vmin.f32 %v243, 1.0
        %s245 = scalar_lea.vmem %s195, 1
        %246 = vst.msk [vmem:[%s245] ss:$4 sm:$0x3] %vm233, %v244
        %v247 = vstv %s210
        %v248 = vmul.f32 %v247, %v215
        %v249 = vstv %s212
        %v250 = vmul.f32 %v249, %v217
        %v251 = vadd.f32 %v248, %v250
        %v252 = vstv %s214
        %v253 = vmul.f32 %v252, %v219
        %v254 = vadd.f32 %v251, %v253
        %v255 = vmax.f32 %v254, -1.0
        %v256 = vmin.f32 %v255, 1.0
        %s257 = scalar_lea.vmem %s195, 2
        %258 = vst.msk [vmem:[%s257] ss:$4 sm:$0x3] %vm233, %v256
        %s259 = smul.u32 2, %s19
        %p260 = scmp.lt.s32.totalorder %s18, 1
        %s261 = scalar_select %p260, %s18, 1
        %p262 = scmp.lt.s32.totalorder %s259, 1
        %s263 = scalar_select %p262, %s259, 1
        %s264 = smul.addr %s261, 2
        %s265 = sadd.s32 %s263, %s264
        %s266 = smul.addr %s265, 4
        %s267 = scalar_lea.vmem %s2, %s266
        // Predicated region
        $region33: #{_forward.3} parent=27 // pred_check
          %p268 = pneg %p95
        $region34: #{_forward.3} parent=27 // pred_check_branch
          %270 = sbr.rel (%p268) target = $region36
        $region35: #{_forward.3} parent=27 // pred_region
          %s271 = smul.u32 2, %s19
        $region36: #{_forward.3} parent=27 // pred_fallthru
          _
      $region28: #{_forward.3} parent=5 // pred_fallthru
        _
      %p272 = scmp.le.s32.totalorder 2, %s9
      // Predicated region
      $region37: #{_forward.3} parent=5 // pred_check
        %p273 = pneg %p272
      $region38: #{_forward.3} parent=5 // pred_check_branch
        %275 = sbr.rel (%p273) target = $region40
      $region39: #{_forward.3} parent=5 // pred_region
        %s276 = ssub.s32 %s9, 2
        // Predicated region
        $region41: #{_forward.3} parent=39 // pred_check
          %p277 = pneg %p101
        $region42: #{_forward.3} parent=39 // pred_check_branch
          %279 = sbr.rel (%p277) target = $region44
        $region43: #{_forward.3} parent=39 // pred_region
          %s280 = smul.u32 2, %s21
          %p281 = scmp.lt.s32.totalorder %s20, 1
          %s282 = scalar_select %p281, %s20, 1
          %p283 = scmp.lt.s32.totalorder %s280, 1
          %s284 = scalar_select %p283, %s280, 1
          %s285 = smul.addr %s282, 2
          %s286 = sadd.s32 %s284, %s285
          %s287 = smul.addr %s286, 4
          %s288 = scalar_lea.vmem %s2, %s287
        $region44: #{_forward.3} parent=39 // pred_fallthru
          _
      $region40: #{_forward.3} parent=5 // pred_fallthru
        _
    $region6: #{_forward.3} parent=1 // loop_footer
      %s13 = sadd.s32 1, %s9
    $region7: #{_forward.3} parent=1 // loop_footer_branch
      %8 = sbr.rel target = $region3
    $region8: #{_forward.3} parent=1 // loop_exit
      _
    %289 = vsyncpa [#allocation3], 1
    %s290 = scalar_lea.sflag [#allocation3], 1
    %291 = vsyncpa %s290, 1

// kernel: _forward.2
$region0: #{_forward.2}
  #allocation0 [shape = 'u32[]', space=smem, size = 0x4, offset = 0x4, fixed_abs, tag = 'smem constant byte address 0x4 - core index']
  #allocation1 [shape = 'u32[144,128]{1,0:T(1,128)}', space=vmem, size = 0x12000, scoped, tag = 'internal scratch']
  #allocation2 [shape = 'f32[32,1]{1,0:T(8,128)}', space=vmem, size = 0x4000, scoped, tag = 'scratch operand']
  %s0 = inlined_call_operand.vmem [shape: bf16[2,27,64], index: 0, kind: input, shape index: {}]
  %s1 = inlined_call_operand.vmem [shape: bf16[32,27], index: 1, kind: input, shape index: {}]
  %s2 = inlined_call_operand.vmem [shape: f32[32,1], index: 2, kind: input, shape index: {}]
  %s3 = inlined_call_operand.vmem [shape: f32[32,32], index: 3, kind: input, shape index: {}]
  %s4 = inlined_call_operand.vmem [shape: f32[1,32], index: 4, kind: input, shape index: {}]
  %s5 = inlined_call_operand.vmem [shape: f32[32,9], index: 5, kind: input, shape index: {}]
  %s6 = inlined_call_operand.vmem [shape: f32[1,9], index: 6, kind: input, shape index: {}]
  %s7 = inlined_call_operand.vmem [shape: f32[2,1,9], index: 7, kind: output, shape index: {}]
  %s8 = sld [smem:[#allocation0]]
  $region69: #{_forward.2} parent=0
    _
  %s10 = ssub.s32 1, %s8
  %s11 = scalar_select 0, %s10, %s8
  loop: start=0, step=1, limit=4
  $region2: #{_forward.2} parent=0 // loop_pre_header
    _
  $region3: #{_forward.2} parent=0 // loop_header
    %s13 = sphi 0, %s17
    %p14 = scmp.ge.s32.totalorder %s13, 4
    %s20 = sphi 0, %s32
    %s21 = sphi 0, %s28
    %s22 = sphi 0, %s20
    %s23 = sphi 0, %s21
    %s24 = sphi 0, %s22
    %s25 = sphi 0, %s23
    %s37 = sphi 0, %s39
    %s40 = sphi 0, %s37
    %s41 = sphi 0, %s40
    %s57 = sphi 0, %s41
    %s61 = sphi 0, %s61
    %s63 = sphi 0, %s61
    %s64 = sphi 0, %s63
    %s78 = sphi 0, %s64
    %s82 = sphi 0, %s82
    %s84 = sphi 0, %s82
    %s85 = sphi 0, %s84
    %s99 = sphi 0, %s85
    %s103 = sphi 0, %s103
    %s105 = sphi 0, %s103
    %s106 = sphi 0, %s105
    %s120 = sphi 0, %s106
    %s124 = sphi 0, %s124
    %s126 = sphi 0, %s124
    %s127 = sphi 0, %s126
    %s141 = sphi 0, %s127
    %s145 = sphi 0, %s145
    %s147 = sphi 0, %s145
    %s148 = sphi 0, %s147
    %s162 = sphi 0, %s148
    %s166 = sphi 0, %s166
    %s168 = sphi 0, %s166
    %s169 = sphi 0, %s168
    %s183 = sphi 0, %s169
    %s189 = sphi 0, %s191
    %s192 = sphi 0, %s189
    %s193 = sphi 0, %s192
    %s209 = sphi 0, %s193
  $region4: #{_forward.2} parent=0 // loop_header_branch
    %16 = sbr.rel (%p14) target = $region8
  $region5: #{_forward.2} parent=0 // loop_body
    %s18 = ssub.s32 %s13, 1
    %s19 = ssub.s32 %s13, 2
    %s26 = sadd.s32 1, %s21
    %p27 = scmp.ge.s32.totalorder %s26, 1
    %s28 = scalar_select %p27, 0, %s26
    %s29 = sadd.s32 1, %s20
    %s30 = scalar_select %p27, %s29, %s20
    %p31 = scmp.ge.s32.totalorder %s30, 2
    %s32 = scalar_select %p31, 0, %s30
    %s33 = ssub.s32 %s20, %s32
    %s34 = ssub.s32 %s21, %s28
    %s35 = sor.u32 %s33, %s34
    %p36 = scmp.eq.s32.totalorder %s35, 0
    %s38 = sadd.s32 %s37, 1
    %s39 = scalar_select %p36, %s37, %s38
    %p42 = pneg %p36
    %p43 = scmp.eq.s32.totalorder %s13, 1
    %p44 = por %p42, %p43
    %p45 = scmp.ne.s32.totalorder %s37, %s40
    %p46 = scmp.eq.s32.totalorder %s13, 0
    %p47 = por %p45, %p46
    %p48 = scmp.ne.s32.totalorder %s37, %s40
    %p49 = scmp.eq.s32.totalorder %s18, 1
    %p50 = por %p48, %p49
    %p51 = scmp.ne.s32.totalorder %s40, %s41
    %p52 = scmp.eq.s32.totalorder %s18, 0
    %p53 = por %p51, %p52
    %p54 = scmp.ne.s32.totalorder %s40, %s41
    %p55 = scmp.eq.s32.totalorder %s19, 1
    %p56 = por %p54, %p55
    %p58 = scmp.ne.s32.totalorder %s41, %s57
    %p59 = scmp.eq.s32.totalorder %s19, 0
    %p60 = por %p58, %p59
    %s62 = sadd.s32 %s61, 1
    %p65 = scmp.eq.s32.totalorder %s13, 1
    %p66 = scmp.ne.s32.totalorder %s61, %s63
    %p67 = scmp.eq.s32.totalorder %s13, 0
    %p68 = por %p66, %p67
    %p69 = scmp.ne.s32.totalorder %s61, %s63
    %p70 = scmp.eq.s32.totalorder %s18, 1
    %p71 = por %p69, %p70
    %p72 = scmp.ne.s32.totalorder %s63, %s64
    %p73 = scmp.eq.s32.totalorder %s18, 0
    %p74 = por %p72, %p73
    %p75 = scmp.ne.s32.totalorder %s63, %s64
    %p76 = scmp.eq.s32.totalorder %s19, 1
    %p77 = por %p75, %p76
    %p79 = scmp.ne.s32.totalorder %s64, %s78
    %p80 = scmp.eq.s32.totalorder %s19, 0
    %p81 = por %p79, %p80
    %s83 = sadd.s32 %s82, 1
    %p86 = scmp.eq.s32.totalorder %s13, 1
    %p87 = scmp.ne.s32.totalorder %s82, %s84
    %p88 = scmp.eq.s32.totalorder %s13, 0
    %p89 = por %p87, %p88
    %p90 = scmp.ne.s32.totalorder %s82, %s84
    %p91 = scmp.eq.s32.totalorder %s18, 1
    %p92 = por %p90, %p91
    %p93 = scmp.ne.s32.totalorder %s84, %s85
    %p94 = scmp.eq.s32.totalorder %s18, 0
    %p95 = por %p93, %p94
    %p96 = scmp.ne.s32.totalorder %s84, %s85
    %p97 = scmp.eq.s32.totalorder %s19, 1
    %p98 = por %p96, %p97
    %p100 = scmp.ne.s32.totalorder %s85, %s99
    %p101 = scmp.eq.s32.totalorder %s19, 0
    %p102 = por %p100, %p101
    %s104 = sadd.s32 %s103, 1
    %p107 = scmp.eq.s32.totalorder %s13, 1
    %p108 = scmp.ne.s32.totalorder %s103, %s105
    %p109 = scmp.eq.s32.totalorder %s13, 0
    %p110 = por %p108, %p109
    %p111 = scmp.ne.s32.totalorder %s103, %s105
    %p112 = scmp.eq.s32.totalorder %s18, 1
    %p113 = por %p111, %p112
    %p114 = scmp.ne.s32.totalorder %s105, %s106
    %p115 = scmp.eq.s32.totalorder %s18, 0
    %p116 = por %p114, %p115
    %p117 = scmp.ne.s32.totalorder %s105, %s106
    %p118 = scmp.eq.s32.totalorder %s19, 1
    %p119 = por %p117, %p118
    %p121 = scmp.ne.s32.totalorder %s106, %s120
    %p122 = scmp.eq.s32.totalorder %s19, 0
    %p123 = por %p121, %p122
    %s125 = sadd.s32 %s124, 1
    %p128 = scmp.eq.s32.totalorder %s13, 1
    %p129 = scmp.ne.s32.totalorder %s124, %s126
    %p130 = scmp.eq.s32.totalorder %s13, 0
    %p131 = por %p129, %p130
    %p132 = scmp.ne.s32.totalorder %s124, %s126
    %p133 = scmp.eq.s32.totalorder %s18, 1
    %p134 = por %p132, %p133
    %p135 = scmp.ne.s32.totalorder %s126, %s127
    %p136 = scmp.eq.s32.totalorder %s18, 0
    %p137 = por %p135, %p136
    %p138 = scmp.ne.s32.totalorder %s126, %s127
    %p139 = scmp.eq.s32.totalorder %s19, 1
    %p140 = por %p138, %p139
    %p142 = scmp.ne.s32.totalorder %s127, %s141
    %p143 = scmp.eq.s32.totalorder %s19, 0
    %p144 = por %p142, %p143
    %s146 = sadd.s32 %s145, 1
    %p149 = scmp.eq.s32.totalorder %s13, 1
    %p150 = scmp.ne.s32.totalorder %s145, %s147
    %p151 = scmp.eq.s32.totalorder %s13, 0
    %p152 = por %p150, %p151
    %p153 = scmp.ne.s32.totalorder %s145, %s147
    %p154 = scmp.eq.s32.totalorder %s18, 1
    %p155 = por %p153, %p154
    %p156 = scmp.ne.s32.totalorder %s147, %s148
    %p157 = scmp.eq.s32.totalorder %s18, 0
    %p158 = por %p156, %p157
    %p159 = scmp.ne.s32.totalorder %s147, %s148
    %p160 = scmp.eq.s32.totalorder %s19, 1
    %p161 = por %p159, %p160
    %p163 = scmp.ne.s32.totalorder %s148, %s162
    %p164 = scmp.eq.s32.totalorder %s19, 0
    %p165 = por %p163, %p164
    %s167 = sadd.s32 %s166, 1
    %p170 = scmp.eq.s32.totalorder %s13, 1
    %p171 = scmp.ne.s32.totalorder %s166, %s168
    %p172 = scmp.eq.s32.totalorder %s13, 0
    %p173 = por %p171, %p172
    %p174 = scmp.ne.s32.totalorder %s166, %s168
    %p175 = scmp.eq.s32.totalorder %s18, 1
    %p176 = por %p174, %p175
    %p177 = scmp.ne.s32.totalorder %s168, %s169
    %p178 = scmp.eq.s32.totalorder %s18, 0
    %p179 = por %p177, %p178
    %p180 = scmp.ne.s32.totalorder %s168, %s169
    %p181 = scmp.eq.s32.totalorder %s19, 1
    %p182 = por %p180, %p181
    %p184 = scmp.ne.s32.totalorder %s169, %s183
    %p185 = scmp.eq.s32.totalorder %s19, 0
    %p186 = por %p184, %p185
    %s187 = ssub.s32 %s20, %s32
    %p188 = scmp.eq.s32.totalorder %s187, 0
    %s190 = sadd.s32 %s189, 1
    %s191 = scalar_select %p188, %s189, %s190
    %p194 = pneg %p188
    %p195 = scmp.eq.s32.totalorder %s13, 1
    %p196 = por %p194, %p195
    %p197 = scmp.ne.s32.totalorder %s189, %s192
    %p198 = scmp.eq.s32.totalorder %s13, 0
    %p199 = por %p197, %p198
    %p200 = scmp.ne.s32.totalorder %s189, %s192
    %p201 = scmp.eq.s32.totalorder %s18, 1
    %p202 = por %p200, %p201
    %p203 = scmp.ne.s32.totalorder %s192, %s193
    %p204 = scmp.eq.s32.totalorder %s18, 0
    %p205 = por %p203, %p204
    %p206 = scmp.ne.s32.totalorder %s192, %s193
    %p207 = scmp.eq.s32.totalorder %s19, 1
    %p208 = por %p206, %p207
    %p210 = scmp.ne.s32.totalorder %s193, %s209
    %p211 = scmp.eq.s32.totalorder %s19, 0
    %p212 = por %p210, %p211
    %p213 = scmp.le.s32.totalorder 1, %s13
    %p214 = scmp.lt.s32.totalorder %s13, 3
    %p215 = pnand %p213, %p214
    %p216 = pneg %p215
    // Predicated region
    $region9: #{_forward.2} parent=5 // pred_check
      _
    $region10: #{_forward.2} parent=5 // pred_check_branch
      %218 = sbr.rel (%p215) target = $region12
    $region11: #{_forward.2} parent=5 // pred_region
      %s219 = ssub.s32 %s13, 1
      // Predicated region
      $region13: #{_forward.2} parent=11 // pred_check
        %p220 = pneg %p74
      $region14: #{_forward.2} parent=11 // pred_check_branch
        %222 = sbr.rel (%p220) target = $region16
      $region15: #{_forward.2} parent=11 // pred_region
        _
      $region16: #{_forward.2} parent=11 // pred_fallthru
        _
      // Predicated region
      $region17: #{_forward.2} parent=11 // pred_check
        %p223 = pneg %p95
      $region18: #{_forward.2} parent=11 // pred_check_branch
        %225 = sbr.rel (%p223) target = $region20
      $region19: #{_forward.2} parent=11 // pred_region
        _
      $region20: #{_forward.2} parent=11 // pred_fallthru
        _
      // Predicated region
      $region21: #{_forward.2} parent=11 // pred_check
        %p226 = pneg %p116
      $region22: #{_forward.2} parent=11 // pred_check_branch
        %228 = sbr.rel (%p226) target = $region24
      $region23: #{_forward.2} parent=11 // pred_region
        _
      $region24: #{_forward.2} parent=11 // pred_fallthru
        _
      // Predicated region
      $region25: #{_forward.2} parent=11 // pred_check
        %p229 = pneg %p137
      $region26: #{_forward.2} parent=11 // pred_check_branch
        %231 = sbr.rel (%p229) target = $region28
      $region27: #{_forward.2} parent=11 // pred_region
        _
      $region28: #{_forward.2} parent=11 // pred_fallthru
        _
      // Predicated region
      $region29: #{_forward.2} parent=11 // pred_check
        %p232 = pneg %p158
      $region30: #{_forward.2} parent=11 // pred_check_branch
        %234 = sbr.rel (%p232) target = $region32
      $region31: #{_forward.2} parent=11 // pred_region
        _
      $region32: #{_forward.2} parent=11 // pred_fallthru
        _
      // Predicated region
      $region33: #{_forward.2} parent=11 // pred_check
        %p235 = pneg %p179
      $region34: #{_forward.2} parent=11 // pred_check_branch
        %237 = sbr.rel (%p235) target = $region36
      $region35: #{_forward.2} parent=11 // pred_region
        _
      $region36: #{_forward.2} parent=11 // pred_fallthru
        _
    $region12: #{_forward.2} parent=5 // pred_fallthru
      _
    %p238 = scmp.lt.s32.totalorder %s13, 2
    // Predicated region
    $region37: #{_forward.2} parent=5 // pred_check
      %p239 = pneg %p238
    $region38: #{_forward.2} parent=5 // pred_check_branch
      %241 = sbr.rel (%p239) target = $region40
    $region39: #{_forward.2} parent=5 // pred_region
      // Predicated region
      $region41: #{_forward.2} parent=39 // pred_check
        %p242 = pneg %p47
      $region42: #{_forward.2} parent=39 // pred_check_branch
        %244 = sbr.rel (%p242) target = $region44
      $region43: #{_forward.2} parent=39 // pred_region
        %p245 = scmp.lt.s32.totalorder %s20, 1
        %s246 = scalar_select %p245, %s20, 1
        %p247 = scmp.lt.s32.totalorder %s21, 0
        %s248 = scalar_select %p247, %s21, 0
        %s249 = smul.addr %s246, 4
        %s250 = sadd.s32 %s248, %s249
        %s251 = smul.addr %s250, 4
        %s252 = scalar_lea.vmem %s0, %s251
      $region44: #{_forward.2} parent=39 // pred_fallthru
        _
    $region40: #{_forward.2} parent=5 // pred_fallthru
      _
    %p253 = scmp.le.s32.totalorder 1, %s13
    %p254 = scmp.lt.s32.totalorder %s13, 3
    %p255 = pnand %p253, %p254
    %p256 = pneg %p255
    // Predicated region
    $region45: #{_forward.2} parent=5 // pred_check
      _
    $region46: #{_forward.2} parent=5 // pred_check_branch
      %258 = sbr.rel (%p255) target = $region48
    $region47: #{_forward.2} parent=5 // pred_region
      %s259 = ssub.s32 %s13, 1
      %p260 = scmp.lt.s32.totalorder %s22, 1
      %s261 = scalar_select %p260, %s22, 1
      %p262 = scmp.lt.s32.totalorder %s23, 0
      %s263 = scalar_select %p262, %s23, 0
      %s264 = smul.addr %s261, 4
      %s265 = sadd.s32 %s263, %s264
      %s266 = smul.addr %s265, 4
      %s267 = scalar_lea.vmem %s0, %s266
      %p268 = pneg %p53
      %p269 = pneg %p50
      %p270 = pneg %p74
      %p271 = pneg %p71
      %p272 = pneg %p95
      %p273 = pneg %p92
      %p274 = pneg %p116
      %p275 = pneg %p113
      %p276 = pneg %p137
      %p277 = pneg %p134
      %p278 = pneg %p158
      %p279 = pneg %p155
      %p280 = pneg %p179
      %p281 = pneg %p176
      %p282 = pneg %p205
      %p283 = pneg %p202
      %p284 = scmp.lt.s32.totalorder %s22, 1
      %s285 = scalar_select %p284, %s22, 1
      %s286 = scalar_lea.vmem %s7, %s285
      %p287 = scmp.lt.s32.totalorder %s22, 1
      %s288 = scalar_select %p287, %s22, 1
      %p289 = scmp.lt.s32.totalorder %s23, 0
      %s290 = scalar_select %p289, %s23, 0
      %s291 = smul.addr %s288, 4
      %s292 = sadd.s32 %s290, %s291
      %s293 = smul.addr %s292, 4
      %s294 = scalar_lea.vmem %s0, %s293
      %p295 = scmp.lt.s32.totalorder %s22, 1
      %s296 = scalar_select %p295, %s22, 1
      %s297 = scalar_lea.vmem %s7, %s296
      %p299 = scmp.eq.s32.totalorder %s23, 0
      // Predicated region
      $region49: #{_forward.2} parent=47 // pred_check
        %p300 = pneg %p299
      $region50: #{_forward.2} parent=47 // pred_check_branch
        %302 = sbr.rel (%p300) target = $region52
      $region51: #{_forward.2} parent=47 // pred_region
        %vm303 = vcmask 7168
        %304 = vst.msk [vmem:[#allocation2] sm:$0xff] %vm303, 0.0
        %305 = vst.msk [vmem:[#allocation2 + $0x8] sm:$0xff] %vm303, 0.0
        %306 = vst.msk [vmem:[#allocation2 + $0x10] sm:$0xff] %vm303, 0.0
        %307 = vst.msk [vmem:[#allocation2 + $0x18] sm:$0xff] %vm303, 0.0
      $region52: #{_forward.2} parent=47 // pred_fallthru
        _
      %v308 = vld [vmem:[%s1] sm:$0xf]
      %v309 = vld [vmem:[%s1 + $0x4] sm:$0xf]
      %v310 = vld [vmem:[%s1 + $0x8] sm:$0xf]
      %v311 = vld [vmem:[%s1 + $0xc] sm:$0xf]
      %v312 = vld [vmem:[%s294] sm:$0xf]
      %v313 = vld [vmem:[%s294 + $0x4] sm:$0xf]
      %v314 = vld [vmem:[%s294 + $0x8] sm:$0xf]
      %v315 = vld [vmem:[%s294 + $0xc] sm:$0x3]
      %v316 = vld [vmem:[%s2] sm:$0xff]
      %v317 = vld [vmem:[%s2 + $0x8] sm:$0xff]
      %v318 = vld [vmem:[%s2 + $0x10] sm:$0xff]
      %v319 = vld [vmem:[%s2 + $0x18] sm:$0xff]
      %321 = vset.pattern.permute.xlu0 0
      %322 = vperm.xlu0 %321, %v316
      %v323 = vpop.permute.xlu0 %322
      %326 = vset.pattern.permute.xlu0 0
      %327 = vperm.xlu0 %326, %v317
      %v328 = vpop.permute.xlu0 %327
      %331 = vset.pattern.permute.xlu0 0
      %332 = vperm.xlu0 %331, %v318
      %v333 = vpop.permute.xlu0 %332
      %336 = vset.pattern.permute.xlu0 0
      %337 = vperm.xlu0 %336, %v319
      %v338 = vpop.permute.xlu0 %337
      %v344 = vunpack.c.l.b16 %v308
      %v345 = vunpack.c.l.b16 %v309
      %v346 = vunpack.c.l.b16 %v310
      %v347 = vunpack.c.l.b16 %v311
      %v348 = vpack.c.b16 %v345, %v344
      %v349 = vpack.c.b16 %v347, %v346
      %v354 = vunpack.c.l.b16 %v312
      %v355 = vunpack.c.l.b16 %v313
      %v356 = vunpack.c.l.b16 %v314
      %v357 = vunpack.c.l.b16 %v315
      %v358 = vpack.c.b16 %v355, %v354
      %v359 = vpack.c.b16 %v357, %v356
      %vm361 = vcmask 220160
      %v363 = vsel %vm361, %v348, 0
      %v366 = vsel %vm361, %v349, 0
      %vm368 = vcmask 1044480
      %vm369 = vcmask 1045504
      %v370 = vsel %vm368, 4294967295, 65535
      %v371 = vsel %vm369, %v370, 0
      %v373 = vand.u32 %v359, %v371
      %375 = vmatprep.subr.bf16.mxu0 0
      %376 = vmatpush1.bf16.msra.mxu0 %v358
      %377 = vmatprep.subr.bf16.mxu0 0
      %378 = vmatpush1.bf16.msra.mxu0 %v373
      %379 = vmatprep.subr.bf16.mxu0 0
      %380 = vmatpush1.bf16.msra.mxu0 0
      %381 = vmatprep.subr.bf16.mxu0 0
      %382 = vmatpush1.bf16.msra.mxu0 0
      %383 = vmatprep.subr.bf16.mxu0 0
      %384 = vmatpush1.bf16.msra.mxu0 0
      %385 = vmatprep.subr.bf16.mxu0 0
      %386 = vmatpush1.bf16.msra.mxu0 0
      %387 = vmatprep.subr.bf16.mxu0 0
      %388 = vmatpush1.bf16.msra.mxu0 0
      %389 = vmatprep.subr.bf16.mxu0 0
      %390 = vmatpush1.bf16.msra.mxu0 0
      %391 = vmatprep.subr.bf16.mxu0 0
      %392 = vmatpush1.bf16.msra.mxu0 0
      %393 = vmatprep.subr.bf16.mxu0 0
      %394 = vmatpush1.bf16.msra.mxu0 0
      %395 = vmatprep.subr.bf16.mxu0 0
      %396 = vmatpush1.bf16.msra.mxu0 0
      %397 = vmatprep.subr.bf16.mxu0 0
      %398 = vmatpush1.bf16.msra.mxu0 0
      %399 = vmatprep.subr.bf16.mxu0 0
      %400 = vmatpush1.bf16.msra.mxu0 0
      %401 = vmatprep.subr.bf16.mxu0 0
      %402 = vmatpush1.bf16.msra.mxu0 0
      %403 = vmatprep.subr.bf16.mxu0 0
      %404 = vmatpush1.bf16.msra.mxu0 0
      %405 = vmatprep.subr.bf16.mxu0 0
      %406 = vmatpush1.bf16.msra.mxu0 0
      %407 = vmatprep.mubr.bf16.mxu0 0
      %408 = vmatmul.mubr.bf16.gmra.mrb[0].mxu0 %v363
      %v409 = vpop.f32.mrb[0].mxu0
      %v410 = vadd.f32 %v323, %v409
      %v411 = vpop.f32.mrb[0].mxu0
      %v412 = vpop.f32.mrb[0].mxu0
      %v413 = vadd.f32 %v328, %v412
      %v414 = vpop.f32.mrb[0].mxu0
      %415 = vmatprep.mubr.bf16.mxu0 0
      %416 = vmatmul.mubr.bf16.gmra.mrb[0].mxu0 %v366
      %v417 = vpop.f32.mrb[0].mxu0
      %v418 = vadd.f32 %v333, %v417
      %v419 = vpop.f32.mrb[0].mxu0
      %v420 = vpop.f32.mrb[0].mxu0
      %v421 = vadd.f32 %v338, %v420
      %v422 = vpop.f32.mrb[0].mxu0
      %423 = vdwg.mxu0
      %v424 = vmax.f32 %v410, 0.0
      %v425 = vmax.f32 %v413, 0.0
      %v426 = vmax.f32 %v418, 0.0
      %v427 = vmax.f32 %v421, 0.0
      %v428 = vld [vmem:[#allocation2] sm:$0xff]
      %v429 = vld [vmem:[#allocation2 + $0x8] sm:$0xff]
      %v430 = vld [vmem:[#allocation2 + $0x10] sm:$0xff]
      %v431 = vld [vmem:[#allocation2 + $0x18] sm:$0xff]
      %vm432 = vcmask 523264
      %v433 = vsel %vm432, %v424, 0.0
      %434 = vadd.xlane.f32.xlu0 %v433
      %v435 = vpop.xlane.xlu0 %434
      %v436 = vsel %vm432, %v425, 0.0
      %437 = vadd.xlane.f32.xlu0 %v436
      %v438 = vpop.xlane.xlu0 %437
      %v439 = vsel %vm432, %v426, 0.0
      %440 = vadd.xlane.f32.xlu0 %v439
      %v441 = vpop.xlane.xlu0 %440
      %v442 = vsel %vm432, %v427, 0.0
      %443 = vadd.xlane.f32.xlu0 %v442
      %v444 = vpop.xlane.xlu0 %443
      %v445 = vadd.f32 %v428, %v435
      %v446 = vadd.f32 %v429, %v438
      %v447 = vadd.f32 %v430, %v441
      %v448 = vadd.f32 %v431, %v444
      %vm449 = vcmask 7168
      %450 = vst.msk [vmem:[#allocation2] sm:$0xff] %vm449, %v445
      %451 = vst.msk [vmem:[#allocation2 + $0x8] sm:$0xff] %vm449, %v446
      %452 = vst.msk [vmem:[#allocation2 + $0x10] sm:$0xff] %vm449, %v447
      %453 = vst.msk [vmem:[#allocation2 + $0x18] sm:$0xff] %vm449, %v448
      // Predicated region
      $region53: #{_forward.2} parent=47 // pred_check
        %p454 = pneg %p299
      $region54: #{_forward.2} parent=47 // pred_check_branch
        %456 = sbr.rel (%p454) target = $region56
      $region55: #{_forward.2} parent=47 // pred_region
        %v457 = vld [vmem:[#allocation2] sm:$0xff]
        %v458 = vld [vmem:[#allocation2 + $0x8] sm:$0xff]
        %v459 = vld [vmem:[#allocation2 + $0x10] sm:$0xff]
        %v460 = vld [vmem:[#allocation2 + $0x18] sm:$0xff]
        %v461 = vmul.f32 %v457, 0.015625
        %v462 = vmul.f32 %v458, 0.015625
        %v463 = vmul.f32 %v459, 0.015625
        %v464 = vmul.f32 %v460, 0.015625
        %v465 = vld [vmem:[%s3] sm:$0xff]
        %v466 = vld [vmem:[%s3 + $0x8] sm:$0xff]
        %v467 = vld [vmem:[%s3 + $0x10] sm:$0xff]
        %v468 = vld [vmem:[%s3 + $0x18] sm:$0xff]
        %470 = vset.pattern.permute.xlu0 0
        %471 = vperm.xlu0 %470, %v461
        %v472 = vpop.permute.xlu0 %471
        %475 = vset.pattern.permute.xlu0 0
        %476 = vperm.xlu0 %475, %v462
        %v477 = vpop.permute.xlu0 %476
        %480 = vset.pattern.permute.xlu0 0
        %481 = vperm.xlu0 %480, %v463
        %v482 = vpop.permute.xlu0 %481
        %485 = vset.pattern.permute.xlu0 0
        %486 = vperm.xlu0 %485, %v464
        %v487 = vpop.permute.xlu0 %486
        %v489 = vmul.f32 %v472, %v465
        %v490 = vmul.f32 %v477, %v466
        %v491 = vmul.f32 %v482, %v467
        %v492 = vmul.f32 %v487, %v468
        %vm493 = vcmask 261120
        %v494 = vsel %vm493, %v489, 0.0
        %v495 = vsel %vm493, %v490, 0.0
        %v496 = vadd.f32 %v494, %v495
        %v497 = vsel %vm493, %v491, 0.0
        %v498 = vadd.f32 %v496, %v497
        %v499 = vsel %vm493, %v492, 0.0
        %v500 = vadd.f32 %v498, %v499
        %v501 = vrot.slane %v500, 4
        %v502 = vadd.f32 %v500, %v501
        %v503 = vrot.slane %v502, 2
        %v504 = vadd.f32 %v502, %v503
        %v505 = vrot.slane %v504, 1
        %v506 = vadd.f32 %v504, %v505
        %v507 = vld [vmem:[%s4] sm:$0x1]
        %v508 = vadd.f32 %v506, %v507
        %v509 = vmax.f32 %v508, 0.0
        %v510 = vld [vmem:[%s5] sm:$0xff]
        %v511 = vld [vmem:[%s5 + $0x8] sm:$0xff]
        %v512 = vld [vmem:[%s5 + $0x10] sm:$0xff]
        %v513 = vld [vmem:[%s5 + $0x18] sm:$0xff]
        %v514 = vld [vmem:[%s6] sm:$0x1]
        %v516 = vsel %vm493, %v509, 0
        %518 = vmatprep.subr.mxu0 0.0
        %519 = vmatpush1.msra.mxu0 %v510
        %520 = vmatprep.subr.mxu0 0.0
        %521 = vmatpush1.msra.mxu0 %v511
        %522 = vmatprep.subr.mxu0 0.0
        %523 = vmatpush1.msra.mxu0 %v512
        %524 = vmatprep.subr.mxu0 0.0
        %525 = vmatpush1.msra.mxu0 %v513
        %526 = vmatprep.subr.mxu0 0.0
        %527 = vmatpush1.msra.mxu0 0.0
        %528 = vmatprep.subr.mxu0 0.0
        %529 = vmatpush1.msra.mxu0 0.0
        %530 = vmatprep.subr.mxu0 0.0
        %531 = vmatpush1.msra.mxu0 0.0
        %532 = vmatprep.subr.mxu0 0.0
        %533 = vmatpush1.msra.mxu0 0.0
        %534 = vmatprep.subr.mxu0 0.0
        %535 = vmatpush1.msra.mxu0 0.0
        %536 = vmatprep.subr.mxu0 0.0
        %537 = vmatpush1.msra.mxu0 0.0
        %538 = vmatprep.subr.mxu0 0.0
        %539 = vmatpush1.msra.mxu0 0.0
        %540 = vmatprep.subr.mxu0 0.0
        %541 = vmatpush1.msra.mxu0 0.0
        %542 = vmatprep.subr.mxu0 0.0
        %543 = vmatpush1.msra.mxu0 0.0
        %544 = vmatprep.subr.mxu0 0.0
        %545 = vmatpush1.msra.mxu0 0.0
        %546 = vmatprep.subr.mxu0 0.0
        %547 = vmatpush1.msra.mxu0 0.0
        %548 = vmatprep.subr.mxu0 0.0
        %549 = vmatpush1.msra.mxu0 0.0
        %550 = vmatprep.subr.mxu0 0.0
        %551 = vmatpush1.msra.mxu0 0.0
        %552 = vmatprep.subr.mxu0 0.0
        %553 = vmatpush1.msra.mxu0 0.0
        %554 = vmatprep.subr.mxu0 0.0
        %555 = vmatpush1.msra.mxu0 0.0
        %556 = vmatprep.subr.mxu0 0.0
        %557 = vmatpush1.msra.mxu0 0.0
        %558 = vmatprep.subr.mxu0 0.0
        %559 = vmatpush1.msra.mxu0 0.0
        %560 = vmatprep.subr.mxu0 0.0
        %561 = vmatpush1.msra.mxu0 0.0
        %562 = vmatprep.subr.mxu0 0.0
        %563 = vmatpush1.msra.mxu0 0.0
        %564 = vmatprep.subr.mxu0 0.0
        %565 = vmatpush1.msra.mxu0 0.0
        %566 = vmatprep.subr.mxu0 0.0
        %567 = vmatpush1.msra.mxu0 0.0
        %568 = vmatprep.subr.mxu0 0.0
        %569 = vmatpush1.msra.mxu0 0.0
        %570 = vmatprep.subr.mxu0 0.0
        %571 = vmatpush1.msra.mxu0 0.0
        %572 = vmatprep.subr.mxu0 0.0
        %573 = vmatpush1.msra.mxu0 0.0
        %574 = vmatprep.subr.mxu0 0.0
        %575 = vmatpush1.msra.mxu0 0.0
        %576 = vmatprep.subr.mxu0 0.0
        %577 = vmatpush1.msra.mxu0 0.0
        %578 = vmatprep.subr.mxu0 0.0
        %579 = vmatpush1.msra.mxu0 0.0
        %580 = vmatprep.subr.mxu0 0.0
        %581 = vmatpush1.msra.mxu0 0.0
        %582 = vmatprep.mubr.f32.mxu0 0.0
        %583 = vmatmul.mubr.f32.gmra.mrb[0].mxu0 %v516
        %v584 = vpop.f32.mrb[0].mxu0
        %v585 = vadd.f32 %v514, %v584
        %v586 = vpop.f32.mrb[0].mxu0
        %587 = vdwg.mxu0
        %v588 = vmax.f32 %v585, 0.0
        %vm589 = vcmask 65536
        %590 = vst.msk [vmem:[%s297] sm:$0x1] %vm589, %v588
      $region56: #{_forward.2} parent=47 // pred_fallthru
        _
      %p591 = scmp.lt.s32.totalorder %s22, 1
      %s592 = scalar_select %p591, %s22, 1
      %s593 = scalar_lea.vmem %s7, %s592
      // Predicated region
      $region57: #{_forward.2} parent=47 // pred_check
        %p594 = pneg %p202
      $region58: #{_forward.2} parent=47 // pred_check_branch
        %596 = sbr.rel (%p594) target = $region60
      $region59: #{_forward.2} parent=47 // pred_region
        _
      $region60: #{_forward.2} parent=47 // pred_fallthru
        _
    $region48: #{_forward.2} parent=5 // pred_fallthru
      _
    %p597 = scmp.le.s32.totalorder 2, %s13
    // Predicated region
    $region61: #{_forward.2} parent=5 // pred_check
      %p598 = pneg %p597
    $region62: #{_forward.2} parent=5 // pred_check_branch
      %600 = sbr.rel (%p598) target = $region64
    $region63: #{_forward.2} parent=5 // pred_region
      %s601 = ssub.s32 %s13, 2
      // Predicated region
      $region65: #{_forward.2} parent=63 // pred_check
        %p602 = pneg %p208
      $region66: #{_forward.2} parent=63 // pred_check_branch
        %604 = sbr.rel (%p602) target = $region68
      $region67: #{_forward.2} parent=63 // pred_region
        %p605 = scmp.lt.s32.totalorder %s24, 1
        %s606 = scalar_select %p605, %s24, 1
        %s607 = scalar_lea.vmem %s7, %s606
      $region68: #{_forward.2} parent=63 // pred_fallthru
        _
    $region64: #{_forward.2} parent=5 // pred_fallthru
      _
  $region6: #{_forward.2} parent=0 // loop_footer
    %s17 = sadd.s32 1, %s13
  $region7: #{_forward.2} parent=0 // loop_footer_branch
    %12 = sbr.rel target = $region3
  $region8: #{_forward.2} parent=0 // loop_exit
    _

</llo_original>
